<compile_context>
chip_gen: v6e
topology: v6e:2x2x1
jax: 0.10.0
libtpu: 0.0.40
codegen_flags: <defaults>
</compile_context>

<pallas_src>
import jax
import jax.numpy as jnp
from jax.experimental import pallas as pl
from jax.experimental.pallas import tpu as pltpu


LANES = 128        # TPU vreg lane width; all feature dims padded to this.
MAX_TILE_B = 512   # rows per grid step (>=512 keeps the stream near HBM roofline).


def _round_up(n, m):
    return (n + m - 1) // m * m


def _sigmoid(x):
    # exp -> EUP, approximate reciprocal -> EUP; keeps VALU pressure low.
    return pl.reciprocal(1.0 + jnp.exp(-x), approx=True)


def mlp_kernel(x_ref,
               w1_ref, b1_ref,
               w2_ref, b2_ref,
               w3_ref, b3_ref,
               w4_ref, b4_ref,
               o_ref):
    # x tile: (TILE_B, 32) f32.  Weights/biases zero-padded to 128 lanes.
    x = x_ref[...]
    h = _sigmoid(jnp.dot(x, w1_ref[...], preferred_element_type=jnp.float32)
                 + b1_ref[...])
    h = _sigmoid(jnp.dot(h, w2_ref[...], preferred_element_type=jnp.float32)
                 + b2_ref[...])
    h = _sigmoid(jnp.dot(h, w3_ref[...], preferred_element_type=jnp.float32)
                 + b3_ref[...])
    out = jnp.dot(h, w4_ref[...], preferred_element_type=jnp.float32) + b4_ref[...]
    o_ref[...] = out.astype(o_ref.dtype)   # lane-dense (TILE_B, 128) store


def _pad2(a, rows, cols):
    return jnp.pad(a, ((0, rows - a.shape[0]), (0, cols - a.shape[1])))


def net_forward(x, params):
    """x: (B, 32) float32.  params: unpadded weights (in,out) and biases (1,out)."""
    B, D = x.shape
    assert D == 32

    # Lane-pad the tiny weights/biases; zero padding keeps the math exact.
    w1 = _pad2(params["w1"], 32, LANES)      # (32, 128)
    w2 = _pad2(params["w2"], LANES, LANES)   # (128, 128), real block [0:32, 0:32]
    w3 = _pad2(params["w3"], LANES, LANES)   # real block [0:32, 0:10]
    w4 = _pad2(params["w4"], LANES, LANES)   # real block [0:10, 0:2]
    b1 = _pad2(params["b1"], 1, LANES)
    b2 = _pad2(params["b2"], 1, LANES)
    b3 = _pad2(params["b3"], 1, LANES)
    b4 = _pad2(params["b4"], 1, LANES)

    # Batch tiling: large tiles (<= 512 rows), pad B up to a tile multiple.
    tile_b = min(MAX_TILE_B, _round_up(B, 8))
    b_pad = _round_up(B, tile_b)
    if b_pad != B:
        x = jnp.pad(x, ((0, b_pad - B), (0, 0)))
    grid = (b_pad // tile_b,)

    const = lambda a: pl.BlockSpec(a.shape, lambda i: (0, 0))

    cost = pl.CostEstimate(
        flops=2 * b_pad * (32 * 32 + 32 * 32 + 32 * 10 + 10 * 2),
        transcendentals=b_pad * (32 + 32 + 10),
        bytes_accessed=b_pad * (32 + 2) * 4
                       + 4 * (32 * 32 + 32 * 32 + 32 * 10 + 10 * 2),
    )

    out_padded = pl.pallas_call(
        mlp_kernel,
        out_shape=jax.ShapeDtypeStruct((b_pad, LANES), jnp.float32),
        grid=grid,
        in_specs=[pl.BlockSpec((tile_b, 32), lambda i: (i, 0)),   # streamed x
                  const(w1), const(b1),
                  const(w2), const(b2),
                  const(w3), const(b3),
                  const(w4), const(b4)],
        out_specs=pl.BlockSpec((tile_b, LANES), lambda i: (i, 0)),
        compiler_params=pltpu.CompilerParams(
            dimension_semantics=("parallel",),      # shard batch across TCs (v7x)
            vmem_limit_bytes=32 * 1024 * 1024,      # plenty of headroom, v7x-safe
        ),
        cost_estimate=cost,
    )(x, w1, b1, w2, b2, w3, b3, w4, b4)

    # Slice the real output out of the lane-padded slab (free in the wrapper).
    return out_padded[:B, :2]


def init_params(key):
    """Deterministic init mimicking nn.Linear's U(-1/sqrt(fan_in), 1/sqrt(fan_in)).
    Weights stored as (in_features, out_features) = PyTorch weight transposed."""
    dims = [(32, 32), (32, 32), (32, 10), (10, 2)]
    params = {}
    for i, (fin, fout) in enumerate(dims, start=1):
        key, kw, kb = jax.random.split(key, 3)
        bound = 1.0 / jnp.sqrt(fin)
        params[f"w{i}"] = jax.random.uniform(
            kw, (fin, fout), jnp.float32, -bound, bound)
        params[f"b{i}"] = jax.random.uniform(
            kb, (1, fout), jnp.float32, -bound, bound)
    return params


if __name__ == "__main__":
    key = jax.random.PRNGKey(0)
    key, kx = jax.random.split(key)

    B = 8
    x = jax.random.normal(kx, (B, 32), jnp.float32)
    params = init_params(key)

    out = net_forward(x, params)
    jax.block_until_ready(out)

    # Reference check in plain JAX (same math, same unpadded params).
    h = 1.0 / (1.0 + jnp.exp(-(x @ params["w1"] + params["b1"])))
    h = 1.0 / (1.0 + jnp.exp(-(h @ params["w2"] + params["b2"])))
    h = 1.0 / (1.0 + jnp.exp(-(h @ params["w3"] + params["b3"])))
    ref = h @ params["w4"] + params["b4"]

    assert out.shape == (B, 2)
    # approx=True reciprocal has ~2^-12 relative error -> loosened tolerance.
    assert jnp.allclose(out, ref, atol=5e-3, rtol=5e-3)

    print("KERNEL_OK")
</pallas_src>

<mosaic_0001>
module attributes {stable_mosaic.version = 11 : i64} {
  func.func @mlp_kernel(%arg0: i32, %arg1: memref<8x32xf32, #tpu.memory_space<vmem>>, %arg2: memref<32x128xf32, #tpu.memory_space<vmem>>, %arg3: memref<1x128xf32, #tpu.memory_space<vmem>>, %arg4: memref<128x128xf32, #tpu.memory_space<vmem>>, %arg5: memref<1x128xf32, #tpu.memory_space<vmem>>, %arg6: memref<128x128xf32, #tpu.memory_space<vmem>>, %arg7: memref<1x128xf32, #tpu.memory_space<vmem>>, %arg8: memref<128x128xf32, #tpu.memory_space<vmem>>, %arg9: memref<1x128xf32, #tpu.memory_space<vmem>>, %arg10: memref<8x128xf32, #tpu.memory_space<vmem>>) attributes {dimension_semantics = [#tpu.dimension_semantics<parallel>], iteration_bounds = array<i64: 1>, scalar_prefetch = 0 : i64, scratch_operands = 0 : i64, tpu.core_type = #tpu.core_type<tc>, window_params = [{transform_indices = @transform_0, window_bounds = array<i64: 8, 32>}, {pipeline_mode = #tpu.pipeline_mode<synchronous>, transform_indices = @transform_1, window_bounds = array<i64: 32, 128>}, {pipeline_mode = #tpu.pipeline_mode<synchronous>, transform_indices = @transform_2, window_bounds = array<i64: 1, 128>}, {pipeline_mode = #tpu.pipeline_mode<synchronous>, transform_indices = @transform_3, window_bounds = array<i64: 128, 128>}, {pipeline_mode = #tpu.pipeline_mode<synchronous>, transform_indices = @transform_4, window_bounds = array<i64: 1, 128>}, {pipeline_mode = #tpu.pipeline_mode<synchronous>, transform_indices = @transform_5, window_bounds = array<i64: 128, 128>}, {pipeline_mode = #tpu.pipeline_mode<synchronous>, transform_indices = @transform_6, window_bounds = array<i64: 1, 128>}, {pipeline_mode = #tpu.pipeline_mode<synchronous>, transform_indices = @transform_7, window_bounds = array<i64: 128, 128>}, {pipeline_mode = #tpu.pipeline_mode<synchronous>, transform_indices = @transform_8, window_bounds = array<i64: 1, 128>}, {transform_indices = @transform_9, window_bounds = array<i64: 8, 128>}]} {
    %c0 = arith.constant 0 : index
    %c0_0 = arith.constant 0 : index
    %0 = vector.load %arg1[%c0, %c0_0] : memref<8x32xf32, #tpu.memory_space<vmem>>, vector<8x32xf32>
    %c0_1 = arith.constant 0 : index
    %c0_2 = arith.constant 0 : index
    %1 = vector.load %arg2[%c0_1, %c0_2] : memref<32x128xf32, #tpu.memory_space<vmem>>, vector<32x128xf32>
    %cst = arith.constant dense<0.000000e+00> : vector<8x128xf32>
    %2 = tpu.matmul %0, %1, %cst {dimension_numbers = #tpu.dot_dimension_numbers<[1], [0], [0], [1], [0, 0, 1, 1], [], []>} : vector<8x32xf32>, vector<32x128xf32>, vector<8x128xf32> -> vector<8x128xf32>
    %c0_3 = arith.constant 0 : index
    %c0_4 = arith.constant 0 : index
    %3 = vector.load %arg3[%c0_3, %c0_4] : memref<1x128xf32, #tpu.memory_space<vmem>>, vector<1x128xf32>
    %4 = vector.broadcast %3 : vector<1x128xf32> to vector<8x128xf32>
    %5 = arith.addf %2, %4 : vector<8x128xf32>
    %cst_5 = arith.constant 0.000000e+00 : f32
    %6 = vector.broadcast %cst_5 : f32 to vector<8x128xf32>
    %7 = arith.subf %6, %5 : vector<8x128xf32>
    %8 = math.exp %7 : vector<8x128xf32>
    %cst_6 = arith.constant 1.000000e+00 : f32
    %9 = vector.broadcast %cst_6 : f32 to vector<8x128xf32>
    %10 = arith.addf %9, %8 : vector<8x128xf32>
    %11 = tpu.reciprocal %10 {approx = true} : vector<8x128xf32> -> vector<8x128xf32>
    %c0_7 = arith.constant 0 : index
    %c0_8 = arith.constant 0 : index
    %12 = vector.load %arg4[%c0_7, %c0_8] : memref<128x128xf32, #tpu.memory_space<vmem>>, vector<128x128xf32>
    %cst_9 = arith.constant dense<0.000000e+00> : vector<8x128xf32>
    %13 = tpu.matmul %11, %12, %cst_9 {dimension_numbers = #tpu.dot_dimension_numbers<[1], [0], [0], [1], [0, 0, 1, 1], [], []>} : vector<8x128xf32>, vector<128x128xf32>, vector<8x128xf32> -> vector<8x128xf32>
    %c0_10 = arith.constant 0 : index
    %c0_11 = arith.constant 0 : index
    %14 = vector.load %arg5[%c0_10, %c0_11] : memref<1x128xf32, #tpu.memory_space<vmem>>, vector<1x128xf32>
    %15 = vector.broadcast %14 : vector<1x128xf32> to vector<8x128xf32>
    %16 = arith.addf %13, %15 : vector<8x128xf32>
    %cst_12 = arith.constant 0.000000e+00 : f32
    %17 = vector.broadcast %cst_12 : f32 to vector<8x128xf32>
    %18 = arith.subf %17, %16 : vector<8x128xf32>
    %19 = math.exp %18 : vector<8x128xf32>
    %cst_13 = arith.constant 1.000000e+00 : f32
    %20 = vector.broadcast %cst_13 : f32 to vector<8x128xf32>
    %21 = arith.addf %20, %19 : vector<8x128xf32>
    %22 = tpu.reciprocal %21 {approx = true} : vector<8x128xf32> -> vector<8x128xf32>
    %c0_14 = arith.constant 0 : index
    %c0_15 = arith.constant 0 : index
    %23 = vector.load %arg6[%c0_14, %c0_15] : memref<128x128xf32, #tpu.memory_space<vmem>>, vector<128x128xf32>
    %cst_16 = arith.constant dense<0.000000e+00> : vector<8x128xf32>
    %24 = tpu.matmul %22, %23, %cst_16 {dimension_numbers = #tpu.dot_dimension_numbers<[1], [0], [0], [1], [0, 0, 1, 1], [], []>} : vector<8x128xf32>, vector<128x128xf32>, vector<8x128xf32> -> vector<8x128xf32>
    %c0_17 = arith.constant 0 : index
    %c0_18 = arith.constant 0 : index
    %25 = vector.load %arg7[%c0_17, %c0_18] : memref<1x128xf32, #tpu.memory_space<vmem>>, vector<1x128xf32>
    %26 = vector.broadcast %25 : vector<1x128xf32> to vector<8x128xf32>
    %27 = arith.addf %24, %26 : vector<8x128xf32>
    %cst_19 = arith.constant 0.000000e+00 : f32
    %28 = vector.broadcast %cst_19 : f32 to vector<8x128xf32>
    %29 = arith.subf %28, %27 : vector<8x128xf32>
    %30 = math.exp %29 : vector<8x128xf32>
    %cst_20 = arith.constant 1.000000e+00 : f32
    %31 = vector.broadcast %cst_20 : f32 to vector<8x128xf32>
    %32 = arith.addf %31, %30 : vector<8x128xf32>
    %33 = tpu.reciprocal %32 {approx = true} : vector<8x128xf32> -> vector<8x128xf32>
    %c0_21 = arith.constant 0 : index
    %c0_22 = arith.constant 0 : index
    %34 = vector.load %arg8[%c0_21, %c0_22] : memref<128x128xf32, #tpu.memory_space<vmem>>, vector<128x128xf32>
    %cst_23 = arith.constant dense<0.000000e+00> : vector<8x128xf32>
    %35 = tpu.matmul %33, %34, %cst_23 {dimension_numbers = #tpu.dot_dimension_numbers<[1], [0], [0], [1], [0, 0, 1, 1], [], []>} : vector<8x128xf32>, vector<128x128xf32>, vector<8x128xf32> -> vector<8x128xf32>
    %c0_24 = arith.constant 0 : index
    %c0_25 = arith.constant 0 : index
    %36 = vector.load %arg9[%c0_24, %c0_25] : memref<1x128xf32, #tpu.memory_space<vmem>>, vector<1x128xf32>
    %37 = vector.broadcast %36 : vector<1x128xf32> to vector<8x128xf32>
    %38 = arith.addf %35, %37 : vector<8x128xf32>
    %c0_26 = arith.constant 0 : index
    %c0_27 = arith.constant 0 : index
    %39 = vector.load %arg10[%c0_26, %c0_27] : memref<8x128xf32, #tpu.memory_space<vmem>>, vector<8x128xf32>
    tpu.vector_store %arg10[%c0_26, %c0_27], %38 {strides = array<i32>} : memref<8x128xf32, #tpu.memory_space<vmem>>, vector<8x128xf32>,
    return
  }
  func.func @transform_0(%arg0: i32) -> (i32, i32) {
    %c0_i32 = arith.constant 0 : i32
    %c0_i32_0 = arith.constant 0 : i32
    return %arg0, %c0_i32 : i32, i32
  }
  func.func @transform_1(%arg0: i32) -> (i32, i32) {
    %c0_i32 = arith.constant 0 : i32
    %c0_i32_0 = arith.constant 0 : i32
    %c0_i32_1 = arith.constant 0 : i32
    return %c0_i32, %c0_i32_0 : i32, i32
  }
  func.func @transform_2(%arg0: i32) -> (i32, i32) {
    %c0_i32 = arith.constant 0 : i32
    %c0_i32_0 = arith.constant 0 : i32
    %c0_i32_1 = arith.constant 0 : i32
    return %c0_i32, %c0_i32_0 : i32, i32
  }
  func.func @transform_3(%arg0: i32) -> (i32, i32) {
    %c0_i32 = arith.constant 0 : i32
    %c0_i32_0 = arith.constant 0 : i32
    %c0_i32_1 = arith.constant 0 : i32
    return %c0_i32, %c0_i32_0 : i32, i32
  }
  func.func @transform_4(%arg0: i32) -> (i32, i32) {
    %c0_i32 = arith.constant 0 : i32
    %c0_i32_0 = arith.constant 0 : i32
    %c0_i32_1 = arith.constant 0 : i32
    return %c0_i32, %c0_i32_0 : i32, i32
  }
  func.func @transform_5(%arg0: i32) -> (i32, i32) {
    %c0_i32 = arith.constant 0 : i32
    %c0_i32_0 = arith.constant 0 : i32
    %c0_i32_1 = arith.constant 0 : i32
    return %c0_i32, %c0_i32_0 : i32, i32
  }
  func.func @transform_6(%arg0: i32) -> (i32, i32) {
    %c0_i32 = arith.constant 0 : i32
    %c0_i32_0 = arith.constant 0 : i32
    %c0_i32_1 = arith.constant 0 : i32
    return %c0_i32, %c0_i32_0 : i32, i32
  }
  func.func @transform_7(%arg0: i32) -> (i32, i32) {
    %c0_i32 = arith.constant 0 : i32
    %c0_i32_0 = arith.constant 0 : i32
    %c0_i32_1 = arith.constant 0 : i32
    return %c0_i32, %c0_i32_0 : i32, i32
  }
  func.func @transform_8(%arg0: i32) -> (i32, i32) {
    %c0_i32 = arith.constant 0 : i32
    %c0_i32_0 = arith.constant 0 : i32
    %c0_i32_1 = arith.constant 0 : i32
    return %c0_i32, %c0_i32_0 : i32, i32
  }
  func.func @transform_9(%arg0: i32) -> (i32, i32) {
    %c0_i32 = arith.constant 0 : i32
    %c0_i32_0 = arith.constant 0 : i32
    return %arg0, %c0_i32 : i32, i32
  }
}

</mosaic_0001>

<llo_original>
// kernel: tpu_custom_call.1
$region0: #{tpu_custom_call.1}
  #allocation0 [shape = 'u32[]', space=smem, size = 0x4, offset = 0x4, fixed_abs, tag = 'smem constant byte address 0x4 - core index']
  #allocation1 [shape = 'u32[144,128]{1,0:T(1,128)}', space=vmem, size = 0x12000, scoped, tag = 'internal scratch']
  %s0 = inlined_call_operand.hbm [shape: f32[8,32], index: 0, kind: input, shape index: {}]
  %s1 = inlined_call_operand.hbm [shape: f32[32,128], index: 1, kind: input, shape index: {}]
  %s2 = inlined_call_operand.vmem [shape: f32[1,128], index: 2, kind: input, shape index: {}]
  %s3 = inlined_call_operand.hbm [shape: f32[128,128], index: 3, kind: input, shape index: {}]
  %s4 = inlined_call_operand.vmem [shape: f32[1,128], index: 4, kind: input, shape index: {}]
  %s5 = inlined_call_operand.hbm [shape: f32[128,128], index: 5, kind: input, shape index: {}]
  %s6 = inlined_call_operand.vmem [shape: f32[1,128], index: 6, kind: input, shape index: {}]
  %s7 = inlined_call_operand.hbm [shape: f32[128,128], index: 7, kind: input, shape index: {}]
  %s8 = inlined_call_operand.vmem [shape: f32[1,128], index: 8, kind: input, shape index: {}]
  %s9 = inlined_call_operand.hbm [shape: f32[8,128], index: 9, kind: output, shape index: {}]
  %s10 = sld [smem:[#allocation0]]
  $region66: #{tpu_custom_call.1} parent=0
    _
  %s12 = ssub.s32 1, %s10
  %s13 = scalar_select 0, %s12, %s10
  $region1: #{tpu_custom_call.1} parent=0
    #allocation2 [shape = 'u8[4096]{0}', space=vmem, size = 0x1000, scoped, tag = 'input window, operand 0, single buffered']
    #allocation3 [shape = 's32[1]{0}', space=sflag, size = 0x4, scoped, tag = 'scoped memory for tpu_custom_call.1']
    #allocation4 [shape = 's32[1]{0}', space=sflag, size = 0x4, scoped, tag = 'scoped memory for tpu_custom_call.1']
    #allocation5 [shape = 'u8[16384]{0}', space=vmem, size = 0x4000, scoped, tag = 'input window, operand 1, single buffered']
    #allocation6 [shape = 's32[1]{0}', space=sflag, size = 0x4, scoped, tag = 'scoped memory for tpu_custom_call.1']
    #allocation7 [shape = 'u8[65536]{0}', space=vmem, size = 0x10000, scoped, tag = 'input window, operand 3, single buffered']
    #allocation8 [shape = 'u8[65536]{0}', space=vmem, size = 0x10000, scoped, tag = 'input window, operand 5, single buffered']
    #allocation9 [shape = 's32[1]{0}', space=sflag, size = 0x4, scoped, tag = 'scoped memory for tpu_custom_call.1']
    #allocation10 [shape = 'u8[65536]{0}', space=vmem, size = 0x10000, scoped, tag = 'input window, operand 7, single buffered']
    #allocation11 [shape = 'u8[4096]{0}', space=vmem, size = 0x1000, scoped, tag = 'output window, operand 0, single buffered']
    %14 = vsyncpa [#allocation3], 0
    %15 = vsyncpa [#allocation6], 0
    %16 = vsyncpa [#allocation9], 0
    %17 = vsyncpa [#allocation4], 0
    // Predicated region
    $region2: #{tpu_custom_call.1} parent=1 // pred_check
      _
    $region3: #{tpu_custom_call.1} parent=1 // pred_check_branch
      %19 = sbr.rel (0) target = $region5
    $region4: #{tpu_custom_call.1} parent=1 // pred_region
      %s21 = ssub.s32 128, 128
      %22 = vsyncadd [#allocation3], %s21
      %s24 = sshll.u32 [#allocation2], 4
      %s25 = int_to_ptr.vmem [resolvable:$true] %s24
      %27 = dma.hbm_to_vmem [thread:$0]  %s0, 128, %s25, [#allocation3]
    $region5: #{tpu_custom_call.1} parent=1 // pred_fallthru
      _
    // Predicated region
    $region6: #{tpu_custom_call.1} parent=1 // pred_check
      _
    $region7: #{tpu_custom_call.1} parent=1 // pred_check_branch
      %29 = sbr.rel (0) target = $region9
    $region8: #{tpu_custom_call.1} parent=1 // pred_region
      %s31 = ssub.s32 512, 512
      %32 = vsyncadd [#allocation6], %s31
      %s33 = sshll.u32 [#allocation5], 4
      %s34 = int_to_ptr.vmem [resolvable:$true] %s33
      %39 = dma.hbm_to_vmem [thread:$0]  %s1, 512, %s34, [#allocation6], 128, 128, 8
    $region9: #{tpu_custom_call.1} parent=1 // pred_fallthru
      _
    // Predicated region
    $region10: #{tpu_custom_call.1} parent=1 // pred_check
      _
    $region11: #{tpu_custom_call.1} parent=1 // pred_check_branch
      %41 = sbr.rel (0) target = $region13
    $region12: #{tpu_custom_call.1} parent=1 // pred_region
      _
    $region13: #{tpu_custom_call.1} parent=1 // pred_fallthru
      _
    // Predicated region
    $region14: #{tpu_custom_call.1} parent=1 // pred_check
      _
    $region15: #{tpu_custom_call.1} parent=1 // pred_check_branch
      %43 = sbr.rel (0) target = $region17
    $region16: #{tpu_custom_call.1} parent=1 // pred_region
      %s45 = ssub.s32 2048, 2048
      %46 = vsyncadd [#allocation6], %s45
      %s47 = sshll.u32 [#allocation7], 4
      %s48 = int_to_ptr.vmem [resolvable:$true] %s47
      %53 = dma.hbm_to_vmem [thread:$0]  %s3, 2048, %s48, [#allocation6], 128, 128, 8
    $region17: #{tpu_custom_call.1} parent=1 // pred_fallthru
      _
    // Predicated region
    $region18: #{tpu_custom_call.1} parent=1 // pred_check
      _
    $region19: #{tpu_custom_call.1} parent=1 // pred_check_branch
      %55 = sbr.rel (0) target = $region21
    $region20: #{tpu_custom_call.1} parent=1 // pred_region
      _
    $region21: #{tpu_custom_call.1} parent=1 // pred_fallthru
      _
    // Predicated region
    $region22: #{tpu_custom_call.1} parent=1 // pred_check
      _
    $region23: #{tpu_custom_call.1} parent=1 // pred_check_branch
      %57 = sbr.rel (0) target = $region25
    $region24: #{tpu_custom_call.1} parent=1 // pred_region
      %s59 = ssub.s32 2048, 2048
      %60 = vsyncadd [#allocation9], %s59
      %s61 = sshll.u32 [#allocation8], 4
      %s62 = int_to_ptr.vmem [resolvable:$true] %s61
      %67 = dma.hbm_to_vmem [thread:$0]  %s5, 2048, %s62, [#allocation9], 128, 128, 8
    $region25: #{tpu_custom_call.1} parent=1 // pred_fallthru
      _
    // Predicated region
    $region26: #{tpu_custom_call.1} parent=1 // pred_check
      _
    $region27: #{tpu_custom_call.1} parent=1 // pred_check_branch
      %69 = sbr.rel (0) target = $region29
    $region28: #{tpu_custom_call.1} parent=1 // pred_region
      _
    $region29: #{tpu_custom_call.1} parent=1 // pred_fallthru
      _
    // Predicated region
    $region30: #{tpu_custom_call.1} parent=1 // pred_check
      _
    $region31: #{tpu_custom_call.1} parent=1 // pred_check_branch
      %71 = sbr.rel (0) target = $region33
    $region32: #{tpu_custom_call.1} parent=1 // pred_region
      %s73 = ssub.s32 2048, 2048
      %74 = vsyncadd [#allocation9], %s73
      %s75 = sshll.u32 [#allocation10], 4
      %s76 = int_to_ptr.vmem [resolvable:$true] %s75
      %81 = dma.hbm_to_vmem [thread:$0]  %s7, 2048, %s76, [#allocation9], 128, 128, 8
    $region33: #{tpu_custom_call.1} parent=1 // pred_fallthru
      _
    // Predicated region
    $region34: #{tpu_custom_call.1} parent=1 // pred_check
      _
    $region35: #{tpu_custom_call.1} parent=1 // pred_check_branch
      %83 = sbr.rel (0) target = $region37
    $region36: #{tpu_custom_call.1} parent=1 // pred_region
      _
    $region37: #{tpu_custom_call.1} parent=1 // pred_fallthru
      _
    // Predicated region
    $region38: #{tpu_custom_call.1} parent=1 // pred_check
      _
    $region39: #{tpu_custom_call.1} parent=1 // pred_check_branch
      %85 = sbr.rel (0) target = $region41
    $region40: #{tpu_custom_call.1} parent=1 // pred_region
      %86 = dma.done [#allocation3], 128
    $region41: #{tpu_custom_call.1} parent=1 // pred_fallthru
      _
    // Predicated region
    $region42: #{tpu_custom_call.1} parent=1 // pred_check
      _
    $region43: #{tpu_custom_call.1} parent=1 // pred_check_branch
      %88 = sbr.rel (0) target = $region45
    $region44: #{tpu_custom_call.1} parent=1 // pred_region
      %89 = dma.done [#allocation6], 512
    $region45: #{tpu_custom_call.1} parent=1 // pred_fallthru
      _
    // Predicated region
    $region46: #{tpu_custom_call.1} parent=1 // pred_check
      _
    $region47: #{tpu_custom_call.1} parent=1 // pred_check_branch
      %91 = sbr.rel (0) target = $region49
    $region48: #{tpu_custom_call.1} parent=1 // pred_region
      %92 = dma.done [#allocation6], 2048
    $region49: #{tpu_custom_call.1} parent=1 // pred_fallthru
      _
    // Predicated region
    $region50: #{tpu_custom_call.1} parent=1 // pred_check
      _
    $region51: #{tpu_custom_call.1} parent=1 // pred_check_branch
      %94 = sbr.rel (0) target = $region53
    $region52: #{tpu_custom_call.1} parent=1 // pred_region
      %95 = dma.done [#allocation9], 2048
    $region53: #{tpu_custom_call.1} parent=1 // pred_fallthru
      _
    // Predicated region
    $region54: #{tpu_custom_call.1} parent=1 // pred_check
      _
    $region55: #{tpu_custom_call.1} parent=1 // pred_check_branch
      %97 = sbr.rel (0) target = $region57
    $region56: #{tpu_custom_call.1} parent=1 // pred_region
      %98 = dma.done [#allocation9], 2048
    $region57: #{tpu_custom_call.1} parent=1 // pred_fallthru
      _
    %v99 = vld [vmem:[#allocation2] sm:$0xff]
    %v100 = vld [vmem:[#allocation5] sm:$0xff]
    %v101 = vld [vmem:[#allocation5 + $0x8] sm:$0xff]
    %v102 = vld [vmem:[#allocation5 + $0x10] sm:$0xff]
    %v103 = vld [vmem:[#allocation5 + $0x18] sm:$0xff]
    %v104 = vld [vmem:[%s2] sm:$0x1]
    %v106 = vlaneseq
    %v107 = vshrl.u32 %v106, 7
    %v108 = vsub.s32 0, %v107
    %v109 = vrot.slane %v104, %v108
    %vm111 = vcmask 261120
    %v113 = vsel %vm111, %v99, 0
    %115 = vmatprep.subr.mxu0 0.0
    %116 = vmatpush1.msra.mxu0 0.0
    %117 = vmatprep.subr.mxu0 0.0
    %118 = vmatpush1.msra.mxu0 0.0
    %119 = vmatprep.subr.mxu0 0.0
    %120 = vmatpush1.msra.mxu0 0.0
    %121 = vmatprep.subr.mxu0 0.0
    %122 = vmatpush1.msra.mxu0 0.0
    %123 = vmatprep.subr.mxu0 0.0
    %124 = vmatpush1.msra.mxu0 0.0
    %125 = vmatprep.subr.mxu0 0.0
    %126 = vmatpush1.msra.mxu0 0.0
    %127 = vmatprep.subr.mxu0 0.0
    %128 = vmatpush1.msra.mxu0 0.0
    %129 = vmatprep.subr.mxu0 0.0
    %130 = vmatpush1.msra.mxu0 0.0
    %131 = vmatprep.subr.mxu0 0.0
    %132 = vmatpush1.msra.mxu0 0.0
    %133 = vmatprep.subr.mxu0 0.0
    %134 = vmatpush1.msra.mxu0 0.0
    %135 = vmatprep.subr.mxu0 0.0
    %136 = vmatpush1.msra.mxu0 0.0
    %137 = vmatprep.subr.mxu0 0.0
    %138 = vmatpush1.msra.mxu0 0.0
    %139 = vmatprep.subr.mxu0 0.0
    %140 = vmatpush1.msra.mxu0 %v103
    %141 = vmatprep.subr.mxu0 0.0
    %142 = vmatpush1.msra.mxu0 %v102
    %143 = vmatprep.subr.mxu0 0.0
    %144 = vmatpush1.msra.mxu0 %v101
    %145 = vmatprep.subr.mxu0 0.0
    %146 = vmatpush1.msra.mxu0 %v100
    %147 = vmatprep.subr.mxu0 0.0
    %148 = vmatpush2.msra.mxu0 0.0
    %149 = vmatprep.subr.mxu0 0.0
    %150 = vmatpush2.msra.mxu0 0.0
    %151 = vmatprep.subr.mxu0 0.0
    %152 = vmatpush2.msra.mxu0 0.0
    %153 = vmatprep.subr.mxu0 0.0
    %154 = vmatpush2.msra.mxu0 0.0
    %155 = vmatprep.subr.mxu0 0.0
    %156 = vmatpush2.msra.mxu0 0.0
    %157 = vmatprep.subr.mxu0 0.0
    %158 = vmatpush2.msra.mxu0 0.0
    %159 = vmatprep.subr.mxu0 0.0
    %160 = vmatpush2.msra.mxu0 0.0
    %161 = vmatprep.subr.mxu0 0.0
    %162 = vmatpush2.msra.mxu0 0.0
    %163 = vmatprep.subr.mxu0 0.0
    %164 = vmatpush2.msra.mxu0 0.0
    %165 = vmatprep.subr.mxu0 0.0
    %166 = vmatpush2.msra.mxu0 0.0
    %167 = vmatprep.subr.mxu0 0.0
    %168 = vmatpush2.msra.mxu0 0.0
    %169 = vmatprep.subr.mxu0 0.0
    %170 = vmatpush2.msra.mxu0 0.0
    %171 = vmatprep.subr.mxu0 0.0
    %172 = vmatpush2.msra.mxu0 0.0
    %173 = vmatprep.subr.mxu0 0.0
    %174 = vmatpush2.msra.mxu0 0.0
    %175 = vmatprep.subr.mxu0 0.0
    %176 = vmatpush2.msra.mxu0 0.0
    %177 = vmatprep.subr.mxu0 0.0
    %178 = vmatpush2.msra.mxu0 0.0
    %179 = vmatprep.mubr.f32.mxu0 0.0
    %180 = vmatmul.mubr.f32.gmra.mxu0 %v113
    %v181 = vpop.f32.mrf.mxu0
    %v182 = vadd.f32 %v109, %v181
    %v183 = vpop.f32.mrf.mxu0
    %184 = vdwg.mxu0
    %v185 = vsub.f32 0.0, %v182
    %v186 = vmul.f32 %v185, 1.442695
    %v187 = vpow.pop %v186
    %v188 = vadd.f32 %v187, 1.0
    %v189 = vrcp.pop %v188
    %v190 = vld [vmem:[#allocation7] sm:$0xff]
    %v191 = vld [vmem:[#allocation7 + $0x8] sm:$0xff]
    %v192 = vld [vmem:[#allocation7 + $0x10] sm:$0xff]
    %v193 = vld [vmem:[#allocation7 + $0x18] sm:$0xff]
    %v194 = vld [vmem:[#allocation7 + $0x20] sm:$0xff]
    %v195 = vld [vmem:[#allocation7 + $0x28] sm:$0xff]
    %v196 = vld [vmem:[#allocation7 + $0x30] sm:$0xff]
    %v197 = vld [vmem:[#allocation7 + $0x38] sm:$0xff]
    %v198 = vld [vmem:[#allocation7 + $0x40] sm:$0xff]
    %v199 = vld [vmem:[#allocation7 + $0x48] sm:$0xff]
    %v200 = vld [vmem:[#allocation7 + $0x50] sm:$0xff]
    %v201 = vld [vmem:[#allocation7 + $0x58] sm:$0xff]
    %v202 = vld [vmem:[#allocation7 + $0x60] sm:$0xff]
    %v203 = vld [vmem:[#allocation7 + $0x68] sm:$0xff]
    %v204 = vld [vmem:[#allocation7 + $0x70] sm:$0xff]
    %v205 = vld [vmem:[#allocation7 + $0x78] sm:$0xff]
    %v206 = vld [vmem:[%s4] sm:$0x1]
    %v208 = vlaneseq
    %v209 = vshrl.u32 %v208, 7
    %v210 = vsub.s32 0, %v209
    %v211 = vrot.slane %v206, %v210
    %213 = vmatprep.subr.mxu0 0.0
    %214 = vmatpush1.msra.mxu0 %v205
    %215 = vmatprep.subr.mxu0 0.0
    %216 = vmatpush1.msra.mxu0 %v204
    %217 = vmatprep.subr.mxu0 0.0
    %218 = vmatpush1.msra.mxu0 %v203
    %219 = vmatprep.subr.mxu0 0.0
    %220 = vmatpush1.msra.mxu0 %v202
    %221 = vmatprep.subr.mxu0 0.0
    %222 = vmatpush1.msra.mxu0 %v201
    %223 = vmatprep.subr.mxu0 0.0
    %224 = vmatpush1.msra.mxu0 %v200
    %225 = vmatprep.subr.mxu0 0.0
    %226 = vmatpush1.msra.mxu0 %v199
    %227 = vmatprep.subr.mxu0 0.0
    %228 = vmatpush1.msra.mxu0 %v198
    %229 = vmatprep.subr.mxu0 0.0
    %230 = vmatpush1.msra.mxu0 %v197
    %231 = vmatprep.subr.mxu0 0.0
    %232 = vmatpush1.msra.mxu0 %v196
    %233 = vmatprep.subr.mxu0 0.0
    %234 = vmatpush1.msra.mxu0 %v195
    %235 = vmatprep.subr.mxu0 0.0
    %236 = vmatpush1.msra.mxu0 %v194
    %237 = vmatprep.subr.mxu0 0.0
    %238 = vmatpush1.msra.mxu0 %v193
    %239 = vmatprep.subr.mxu0 0.0
    %240 = vmatpush1.msra.mxu0 %v192
    %241 = vmatprep.subr.mxu0 0.0
    %242 = vmatpush1.msra.mxu0 %v191
    %243 = vmatprep.subr.mxu0 0.0
    %244 = vmatpush1.msra.mxu0 %v190
    %245 = vmatprep.subr.mxu0 0.0
    %246 = vmatpush2.msra.mxu0 0.0
    %247 = vmatprep.subr.mxu0 0.0
    %248 = vmatpush2.msra.mxu0 0.0
    %249 = vmatprep.subr.mxu0 0.0
    %250 = vmatpush2.msra.mxu0 0.0
    %251 = vmatprep.subr.mxu0 0.0
    %252 = vmatpush2.msra.mxu0 0.0
    %253 = vmatprep.subr.mxu0 0.0
    %254 = vmatpush2.msra.mxu0 0.0
    %255 = vmatprep.subr.mxu0 0.0
    %256 = vmatpush2.msra.mxu0 0.0
    %257 = vmatprep.subr.mxu0 0.0
    %258 = vmatpush2.msra.mxu0 0.0
    %259 = vmatprep.subr.mxu0 0.0
    %260 = vmatpush2.msra.mxu0 0.0
    %261 = vmatprep.subr.mxu0 0.0
    %262 = vmatpush2.msra.mxu0 0.0
    %263 = vmatprep.subr.mxu0 0.0
    %264 = vmatpush2.msra.mxu0 0.0
    %265 = vmatprep.subr.mxu0 0.0
    %266 = vmatpush2.msra.mxu0 0.0
    %267 = vmatprep.subr.mxu0 0.0
    %268 = vmatpush2.msra.mxu0 0.0
    %269 = vmatprep.subr.mxu0 0.0
    %270 = vmatpush2.msra.mxu0 0.0
    %271 = vmatprep.subr.mxu0 0.0
    %272 = vmatpush2.msra.mxu0 0.0
    %273 = vmatprep.subr.mxu0 0.0
    %274 = vmatpush2.msra.mxu0 0.0
    %275 = vmatprep.subr.mxu0 0.0
    %276 = vmatpush2.msra.mxu0 0.0
    %277 = vmatprep.mubr.f32.mxu0 0.0
    %278 = vmatmul.mubr.f32.gmra.mxu0 %v189
    %v279 = vpop.f32.mrf.mxu0
    %v280 = vadd.f32 %v211, %v279
    %v281 = vpop.f32.mrf.mxu0
    %282 = vdwg.mxu0
    %v283 = vsub.f32 0.0, %v280
    %v284 = vmul.f32 %v283, 1.442695
    %v285 = vpow.pop %v284
    %v286 = vadd.f32 %v285, 1.0
    %v287 = vrcp.pop %v286
    %v288 = vld [vmem:[#allocation8] sm:$0xff]
    %v289 = vld [vmem:[#allocation8 + $0x8] sm:$0xff]
    %v290 = vld [vmem:[#allocation8 + $0x10] sm:$0xff]
    %v291 = vld [vmem:[#allocation8 + $0x18] sm:$0xff]
    %v292 = vld [vmem:[#allocation8 + $0x20] sm:$0xff]
    %v293 = vld [vmem:[#allocation8 + $0x28] sm:$0xff]
    %v294 = vld [vmem:[#allocation8 + $0x30] sm:$0xff]
    %v295 = vld [vmem:[#allocation8 + $0x38] sm:$0xff]
    %v296 = vld [vmem:[#allocation8 + $0x40] sm:$0xff]
    %v297 = vld [vmem:[#allocation8 + $0x48] sm:$0xff]
    %v298 = vld [vmem:[#allocation8 + $0x50] sm:$0xff]
    %v299 = vld [vmem:[#allocation8 + $0x58] sm:$0xff]
    %v300 = vld [vmem:[#allocation8 + $0x60] sm:$0xff]
    %v301 = vld [vmem:[#allocation8 + $0x68] sm:$0xff]
    %v302 = vld [vmem:[#allocation8 + $0x70] sm:$0xff]
    %v303 = vld [vmem:[#allocation8 + $0x78] sm:$0xff]
    %v304 = vld [vmem:[%s6] sm:$0x1]
    %v306 = vlaneseq
    %v307 = vshrl.u32 %v306, 7
    %v308 = vsub.s32 0, %v307
    %v309 = vrot.slane %v304, %v308
    %311 = vmatprep.subr.mxu0 0.0
    %312 = vmatpush1.msra.mxu0 %v303
    %313 = vmatprep.subr.mxu0 0.0
    %314 = vmatpush1.msra.mxu0 %v302
    %315 = vmatprep.subr.mxu0 0.0
    %316 = vmatpush1.msra.mxu0 %v301
    %317 = vmatprep.subr.mxu0 0.0
    %318 = vmatpush1.msra.mxu0 %v300
    %319 = vmatprep.subr.mxu0 0.0
    %320 = vmatpush1.msra.mxu0 %v299
    %321 = vmatprep.subr.mxu0 0.0
    %322 = vmatpush1.msra.mxu0 %v298
    %323 = vmatprep.subr.mxu0 0.0
    %324 = vmatpush1.msra.mxu0 %v297
    %325 = vmatprep.subr.mxu0 0.0
    %326 = vmatpush1.msra.mxu0 %v296
    %327 = vmatprep.subr.mxu0 0.0
    %328 = vmatpush1.msra.mxu0 %v295
    %329 = vmatprep.subr.mxu0 0.0
    %330 = vmatpush1.msra.mxu0 %v294
    %331 = vmatprep.subr.mxu0 0.0
    %332 = vmatpush1.msra.mxu0 %v293
    %333 = vmatprep.subr.mxu0 0.0
    %334 = vmatpush1.msra.mxu0 %v292
    %335 = vmatprep.subr.mxu0 0.0
    %336 = vmatpush1.msra.mxu0 %v291
    %337 = vmatprep.subr.mxu0 0.0
    %338 = vmatpush1.msra.mxu0 %v290
    %339 = vmatprep.subr.mxu0 0.0
    %340 = vmatpush1.msra.mxu0 %v289
    %341 = vmatprep.subr.mxu0 0.0
    %342 = vmatpush1.msra.mxu0 %v288
    %343 = vmatprep.subr.mxu0 0.0
    %344 = vmatpush2.msra.mxu0 0.0
    %345 = vmatprep.subr.mxu0 0.0
    %346 = vmatpush2.msra.mxu0 0.0
    %347 = vmatprep.subr.mxu0 0.0
    %348 = vmatpush2.msra.mxu0 0.0
    %349 = vmatprep.subr.mxu0 0.0
    %350 = vmatpush2.msra.mxu0 0.0
    %351 = vmatprep.subr.mxu0 0.0
    %352 = vmatpush2.msra.mxu0 0.0
    %353 = vmatprep.subr.mxu0 0.0
    %354 = vmatpush2.msra.mxu0 0.0
    %355 = vmatprep.subr.mxu0 0.0
    %356 = vmatpush2.msra.mxu0 0.0
    %357 = vmatprep.subr.mxu0 0.0
    %358 = vmatpush2.msra.mxu0 0.0
    %359 = vmatprep.subr.mxu0 0.0
    %360 = vmatpush2.msra.mxu0 0.0
    %361 = vmatprep.subr.mxu0 0.0
    %362 = vmatpush2.msra.mxu0 0.0
    %363 = vmatprep.subr.mxu0 0.0
    %364 = vmatpush2.msra.mxu0 0.0
    %365 = vmatprep.subr.mxu0 0.0
    %366 = vmatpush2.msra.mxu0 0.0
    %367 = vmatprep.subr.mxu0 0.0
    %368 = vmatpush2.msra.mxu0 0.0
    %369 = vmatprep.subr.mxu0 0.0
    %370 = vmatpush2.msra.mxu0 0.0
    %371 = vmatprep.subr.mxu0 0.0
    %372 = vmatpush2.msra.mxu0 0.0
    %373 = vmatprep.subr.mxu0 0.0
    %374 = vmatpush2.msra.mxu0 0.0
    %375 = vmatprep.mubr.f32.mxu0 0.0
    %376 = vmatmul.mubr.f32.gmra.mxu0 %v287
    %v377 = vpop.f32.mrf.mxu0
    %v378 = vadd.f32 %v309, %v377
    %v379 = vpop.f32.mrf.mxu0
    %380 = vdwg.mxu0
    %v381 = vsub.f32 0.0, %v378
    %v382 = vmul.f32 %v381, 1.442695
    %v383 = vpow.pop %v382
    %v384 = vadd.f32 %v383, 1.0
    %v385 = vrcp.pop %v384
    %v386 = vld [vmem:[#allocation10] sm:$0xff]
    %v387 = vld [vmem:[#allocation10 + $0x8] sm:$0xff]
    %v388 = vld [vmem:[#allocation10 + $0x10] sm:$0xff]
    %v389 = vld [vmem:[#allocation10 + $0x18] sm:$0xff]
    %v390 = vld [vmem:[#allocation10 + $0x20] sm:$0xff]
    %v391 = vld [vmem:[#allocation10 + $0x28] sm:$0xff]
    %v392 = vld [vmem:[#allocation10 + $0x30] sm:$0xff]
    %v393 = vld [vmem:[#allocation10 + $0x38] sm:$0xff]
    %v394 = vld [vmem:[#allocation10 + $0x40] sm:$0xff]
    %v395 = vld [vmem:[#allocation10 + $0x48] sm:$0xff]
    %v396 = vld [vmem:[#allocation10 + $0x50] sm:$0xff]
    %v397 = vld [vmem:[#allocation10 + $0x58] sm:$0xff]
    %v398 = vld [vmem:[#allocation10 + $0x60] sm:$0xff]
    %v399 = vld [vmem:[#allocation10 + $0x68] sm:$0xff]
    %v400 = vld [vmem:[#allocation10 + $0x70] sm:$0xff]
    %v401 = vld [vmem:[#allocation10 + $0x78] sm:$0xff]
    %v402 = vld [vmem:[%s8] sm:$0x1]
    %v404 = vlaneseq
    %v405 = vshrl.u32 %v404, 7
    %v406 = vsub.s32 0, %v405
    %v407 = vrot.slane %v402, %v406
    %409 = vmatprep.subr.mxu0 0.0
    %410 = vmatpush1.msra.mxu0 %v401
    %411 = vmatprep.subr.mxu0 0.0
    %412 = vmatpush1.msra.mxu0 %v400
    %413 = vmatprep.subr.mxu0 0.0
    %414 = vmatpush1.msra.mxu0 %v399
    %415 = vmatprep.subr.mxu0 0.0
    %416 = vmatpush1.msra.mxu0 %v398
    %417 = vmatprep.subr.mxu0 0.0
    %418 = vmatpush1.msra.mxu0 %v397
    %419 = vmatprep.subr.mxu0 0.0
    %420 = vmatpush1.msra.mxu0 %v396
    %421 = vmatprep.subr.mxu0 0.0
    %422 = vmatpush1.msra.mxu0 %v395
    %423 = vmatprep.subr.mxu0 0.0
    %424 = vmatpush1.msra.mxu0 %v394
    %425 = vmatprep.subr.mxu0 0.0
    %426 = vmatpush1.msra.mxu0 %v393
    %427 = vmatprep.subr.mxu0 0.0
    %428 = vmatpush1.msra.mxu0 %v392
    %429 = vmatprep.subr.mxu0 0.0
    %430 = vmatpush1.msra.mxu0 %v391
    %431 = vmatprep.subr.mxu0 0.0
    %432 = vmatpush1.msra.mxu0 %v390
    %433 = vmatprep.subr.mxu0 0.0
    %434 = vmatpush1.msra.mxu0 %v389
    %435 = vmatprep.subr.mxu0 0.0
    %436 = vmatpush1.msra.mxu0 %v388
    %437 = vmatprep.subr.mxu0 0.0
    %438 = vmatpush1.msra.mxu0 %v387
    %439 = vmatprep.subr.mxu0 0.0
    %440 = vmatpush1.msra.mxu0 %v386
    %441 = vmatprep.subr.mxu0 0.0
    %442 = vmatpush2.msra.mxu0 0.0
    %443 = vmatprep.subr.mxu0 0.0
    %444 = vmatpush2.msra.mxu0 0.0
    %445 = vmatprep.subr.mxu0 0.0
    %446 = vmatpush2.msra.mxu0 0.0
    %447 = vmatprep.subr.mxu0 0.0
    %448 = vmatpush2.msra.mxu0 0.0
    %449 = vmatprep.subr.mxu0 0.0
    %450 = vmatpush2.msra.mxu0 0.0
    %451 = vmatprep.subr.mxu0 0.0
    %452 = vmatpush2.msra.mxu0 0.0
    %453 = vmatprep.subr.mxu0 0.0
    %454 = vmatpush2.msra.mxu0 0.0
    %455 = vmatprep.subr.mxu0 0.0
    %456 = vmatpush2.msra.mxu0 0.0
    %457 = vmatprep.subr.mxu0 0.0
    %458 = vmatpush2.msra.mxu0 0.0
    %459 = vmatprep.subr.mxu0 0.0
    %460 = vmatpush2.msra.mxu0 0.0
    %461 = vmatprep.subr.mxu0 0.0
    %462 = vmatpush2.msra.mxu0 0.0
    %463 = vmatprep.subr.mxu0 0.0
    %464 = vmatpush2.msra.mxu0 0.0
    %465 = vmatprep.subr.mxu0 0.0
    %466 = vmatpush2.msra.mxu0 0.0
    %467 = vmatprep.subr.mxu0 0.0
    %468 = vmatpush2.msra.mxu0 0.0
    %469 = vmatprep.subr.mxu0 0.0
    %470 = vmatpush2.msra.mxu0 0.0
    %471 = vmatprep.subr.mxu0 0.0
    %472 = vmatpush2.msra.mxu0 0.0
    %473 = vmatprep.mubr.f32.mxu0 0.0
    %474 = vmatmul.mubr.f32.gmra.mxu0 %v385
    %v475 = vpop.f32.mrf.mxu0
    %v476 = vadd.f32 %v407, %v475
    %v477 = vpop.f32.mrf.mxu0
    %478 = vdwg.mxu0
    %479 = vst [vmem:[#allocation11] sm:$0xff] %v476
    // Predicated region
    $region58: #{tpu_custom_call.1} parent=1 // pred_check
      _
    $region59: #{tpu_custom_call.1} parent=1 // pred_check_branch
      %481 = sbr.rel (0) target = $region61
    $region60: #{tpu_custom_call.1} parent=1 // pred_region
      %s483 = ssub.s32 128, 128
      %484 = vsyncadd [#allocation4], %s483
      %s486 = sshll.u32 [#allocation11], 4
      %s487 = int_to_ptr.vmem [resolvable:$true] %s486
      %489 = dma.vmem_to_hbm [thread:$0]  %s487, 128, %s9, [#allocation4]
    $region61: #{tpu_custom_call.1} parent=1 // pred_fallthru
      _
    // Predicated region
    $region62: #{tpu_custom_call.1} parent=1 // pred_check
      _
    $region63: #{tpu_custom_call.1} parent=1 // pred_check_branch
      %491 = sbr.rel (0) target = $region65
    $region64: #{tpu_custom_call.1} parent=1 // pred_region
      %492 = dma.done [#allocation4], 128
    $region65: #{tpu_custom_call.1} parent=1 // pred_fallthru
      _
    %493 = vsyncpa [#allocation3], 1
    %494 = vsyncpa [#allocation6], 1
    %495 = vsyncpa [#allocation9], 1
    %496 = vsyncpa [#allocation4], 1

</llo_original>
